<compile_context>
chip_gen: v5e
topology: v5e:2x2
jax: 0.10.0
libtpu: 0.0.40
codegen_flags: <defaults>
</compile_context>

<pallas_src>
import jax
import jax.numpy as jnp
from jax.experimental import pallas as pl
from jax.experimental.pallas import tpu as pltpu


def _round_up(x, m):
    return ((x + m - 1) // m) * m


def _gen_states_kernel(idx_ref, w_ref, out_ref):
    """One batch tile: one-hot gather + sigmoid, interleaved [p, 1-p] output.

    idx_ref : VMEM (TB, 1) int32             -- embedding row ids for this tile
    w_ref   : VMEM (dat_num, 2*del_num) f32  -- resident sign-interleaved table
    out_ref : VMEM (TB, 2*del_num) f32       -- out[:, 2d] = p_d, out[:, 2d+1] = 1 - p_d
    """
    tb = idx_ref.shape[0]
    dat_num = w_ref.shape[0]

    # One-hot selection matrix (values 0/1, exact in bf16).
    ids = idx_ref[...]                                              # (TB, 1)
    cols = jax.lax.broadcasted_iota(jnp.int32, (tb, dat_num), 1)    # (TB, dat_num)
    onehot = (ids == cols).astype(jnp.bfloat16)

    # Split the f32 table into three bf16 limbs: w == hi + mid + lo exactly.
    w = w_ref[...]
    w_hi = w.astype(jnp.bfloat16)
    r1 = w - w_hi.astype(jnp.float32)
    w_mid = r1.astype(jnp.bfloat16)
    w_lo = (r1 - w_mid.astype(jnp.float32)).astype(jnp.bfloat16)

    # Exact-f32 gather on the MXU: three native bf16 matmuls, f32 accumulation.
    z = jnp.dot(onehot, w_hi, preferred_element_type=jnp.float32)
    z = z + jnp.dot(onehot, w_mid, preferred_element_type=jnp.float32)
    z = z + jnp.dot(onehot, w_lo, preferred_element_type=jnp.float32)

    # z[:, 2d] = x_d, z[:, 2d+1] = -x_d  ->  sigmoid gives [p_d, 1 - p_d].
    out_ref[...] = jax.nn.sigmoid(z).astype(out_ref.dtype)


def generator_states_discrete(idx, emb_weight, *, block_b=256):
    """idx: (B,) int, emb_weight: (dat_num, del_num) f32 -> (B, del_num, 2) f32."""
    B = idx.shape[0]
    dat_num, del_num = emb_weight.shape

    # Batch tile: multiple of 8 sublanes, capped at block_b.
    tb = min(_round_up(block_b, 8), _round_up(B, 8))
    b_pad = int(pl.cdiv(B, tb)) * tb
    grid = (b_pad // tb,)

    # Pad indices (row 0 is always valid) and lay them out as a (B_pad, 1) column.
    idx_p = jnp.zeros((b_pad, 1), jnp.int32).at[:B, 0].set(idx.astype(jnp.int32))

    # Sign-interleaved table: w[k, 2d] = emb[k, d], w[k, 2d+1] = -emb[k, d].
    # (One-time table-sized relayout in plain XLA; in a real model this can be
    #  precomputed once from the parameter.)
    w = jnp.stack([emb_weight, -emb_weight], axis=-1).reshape(dat_num, 2 * del_num)
    w = w.astype(jnp.float32)

    # Explicit VMEM budget (review: v7x has 64 MiB VMEM vs 128 MiB on v5e/v6e).
    lane = 128
    w_bytes = dat_num * max(2 * del_num, lane) * 4
    idx_block_bytes = tb * lane * 4
    out_block_bytes = tb * max(2 * del_num, lane) * 4
    need = 6 * w_bytes + 2 * (idx_block_bytes + out_block_bytes) + (4 << 20)
    vmem_limit = int(min(max(need, 32 << 20), 112 << 20))
    # TODO(synk): for tables too large to keep resident (esp. v7x's 64 MiB VMEM),
    # shard dat_num over a grid axis or fall back to a manual per-row DMA gather.

    out = pl.pallas_call(
        _gen_states_kernel,
        out_shape=jax.ShapeDtypeStruct((b_pad, 2 * del_num), jnp.float32),
        grid=grid,
        in_specs=[
            pl.BlockSpec((tb, 1), lambda i: (i, 0)),                  # idx tile
            pl.BlockSpec((dat_num, 2 * del_num), lambda i: (0, 0)),   # resident table
        ],
        out_specs=pl.BlockSpec((tb, 2 * del_num), lambda i: (i, 0)),
        compiler_params=pltpu.CompilerParams(
            dimension_semantics=("parallel",),   # independent batch tiles (v7x megacore)
            vmem_limit_bytes=vmem_limit,
        ),
    )(idx_p, w)

    # Interleaved (B_pad, 2*del_num) -> (B, del_num, 2): pure reshape, no transpose.
    return out[:B].reshape(B, del_num, 2)


def _reference(idx, emb_weight):
    pos = jax.nn.sigmoid(emb_weight[idx])               # (B, del_num)
    return jnp.stack([pos, 1.0 - pos], axis=2)          # (B, del_num, 2)


if __name__ == "__main__":
    key = jax.random.PRNGKey(0)
    k_emb, k_idx = jax.random.split(key)

    dat_num, del_num, batch = 16, 32, 8

    # nn.Embedding default init: N(0, 1)
    emb_weight = jax.random.normal(k_emb, (dat_num, del_num), dtype=jnp.float32)
    idx = jax.random.randint(k_idx, (batch,), 0, dat_num, dtype=jnp.int32)

    probs = generator_states_discrete(idx, emb_weight)
    probs = jax.block_until_ready(probs)

    ref = _reference(idx, emb_weight)
    assert probs.shape == (batch, del_num, 2), probs.shape
    assert jnp.allclose(probs, ref, atol=1e-5, rtol=1e-5), (
        "max abs err = %g" % float(jnp.max(jnp.abs(probs - ref)))
    )

    print("KERNEL_OK")
</pallas_src>

<mosaic_0001>
module attributes {stable_mosaic.version = 11 : i64} {
  func.func @_gen_states_kernel(%arg0: i32, %arg1: memref<8x1xi32, #tpu.memory_space<vmem>>, %arg2: memref<16x64xf32, #tpu.memory_space<vmem>>, %arg3: memref<8x64xf32, #tpu.memory_space<vmem>>) attributes {dimension_semantics = [#tpu.dimension_semantics<parallel>], iteration_bounds = array<i64: 1>, scalar_prefetch = 0 : i64, scratch_operands = 0 : i64, tpu.core_type = #tpu.core_type<tc>, window_params = [{transform_indices = @transform_0, window_bounds = array<i64: 8, 1>}, {pipeline_mode = #tpu.pipeline_mode<synchronous>, transform_indices = @transform_1, window_bounds = array<i64: 16, 64>}, {transform_indices = @transform_2, window_bounds = array<i64: 8, 64>}]} {
    %c0 = arith.constant 0 : index
    %c0_0 = arith.constant 0 : index
    %0 = vector.load %arg1[%c0, %c0_0] : memref<8x1xi32, #tpu.memory_space<vmem>>, vector<8x1xi32>
    %1 = tpu.iota {dimensions = array<i32: 1>} : vector<8x16xi32>
    %2 = vector.broadcast %0 : vector<8x1xi32> to vector<8x16xi32>
    %3 = arith.cmpi eq, %2, %1 : vector<8x16xi32>
    %4 = arith.extui %3 : vector<8x16xi1> to vector<8x16xi32>
    %5 = arith.sitofp %4 : vector<8x16xi32> to vector<8x16xf32>
    %6 = arith.truncf %5 : vector<8x16xf32> to vector<8x16xbf16>
    %c0_1 = arith.constant 0 : index
    %c0_2 = arith.constant 0 : index
    %7 = vector.load %arg2[%c0_1, %c0_2] : memref<16x64xf32, #tpu.memory_space<vmem>>, vector<16x64xf32>
    %8 = arith.truncf %7 : vector<16x64xf32> to vector<16x64xbf16>
    %9 = arith.extf %8 : vector<16x64xbf16> to vector<16x64xf32>
    %10 = arith.subf %7, %9 : vector<16x64xf32>
    %11 = arith.truncf %10 : vector<16x64xf32> to vector<16x64xbf16>
    %12 = arith.extf %11 : vector<16x64xbf16> to vector<16x64xf32>
    %13 = arith.subf %10, %12 : vector<16x64xf32>
    %14 = arith.truncf %13 : vector<16x64xf32> to vector<16x64xbf16>
    %cst = arith.constant dense<0.000000e+00> : vector<8x64xf32>
    %15 = tpu.matmul %6, %8, %cst {dimension_numbers = #tpu.dot_dimension_numbers<[1], [0], [0], [1], [0, 0, 1, 1], [], []>} : vector<8x16xbf16>, vector<16x64xbf16>, vector<8x64xf32> -> vector<8x64xf32>
    %cst_3 = arith.constant dense<0.000000e+00> : vector<8x64xf32>
    %16 = tpu.matmul %6, %11, %cst_3 {dimension_numbers = #tpu.dot_dimension_numbers<[1], [0], [0], [1], [0, 0, 1, 1], [], []>} : vector<8x16xbf16>, vector<16x64xbf16>, vector<8x64xf32> -> vector<8x64xf32>
    %17 = arith.addf %15, %16 : vector<8x64xf32>
    %cst_4 = arith.constant dense<0.000000e+00> : vector<8x64xf32>
    %18 = tpu.matmul %6, %14, %cst_4 {dimension_numbers = #tpu.dot_dimension_numbers<[1], [0], [0], [1], [0, 0, 1, 1], [], []>} : vector<8x16xbf16>, vector<16x64xbf16>, vector<8x64xf32> -> vector<8x64xf32>
    %19 = arith.addf %17, %18 : vector<8x64xf32>
    %20 = arith.negf %19 : vector<8x64xf32>
    %21 = math.exp %20 : vector<8x64xf32>
    %cst_5 = arith.constant 1.000000e+00 : f32
    %22 = vector.broadcast %cst_5 : f32 to vector<8x64xf32>
    %23 = arith.addf %22, %21 : vector<8x64xf32>
    %24 = arith.divf %22, %23 : vector<8x64xf32>
    %c0_6 = arith.constant 0 : index
    %c0_7 = arith.constant 0 : index
    %25 = vector.load %arg3[%c0_6, %c0_7] : memref<8x64xf32, #tpu.memory_space<vmem>>, vector<8x64xf32>
    tpu.vector_store %arg3[%c0_6, %c0_7], %24 {strides = array<i32>} : memref<8x64xf32, #tpu.memory_space<vmem>>, vector<8x64xf32>,
    return
  }
  func.func @transform_0(%arg0: i32) -> (i32, i32) {
    %c0_i32 = arith.constant 0 : i32
    %c0_i32_0 = arith.constant 0 : i32
    return %arg0, %c0_i32 : i32, i32
  }
  func.func @transform_1(%arg0: i32) -> (i32, i32) {
    %c0_i32 = arith.constant 0 : i32
    %c0_i32_0 = arith.constant 0 : i32
    %c0_i32_1 = arith.constant 0 : i32
    return %c0_i32, %c0_i32_0 : i32, i32
  }
  func.func @transform_2(%arg0: i32) -> (i32, i32) {
    %c0_i32 = arith.constant 0 : i32
    %c0_i32_0 = arith.constant 0 : i32
    return %arg0, %c0_i32 : i32, i32
  }
}

</mosaic_0001>

<llo_original>
// kernel: tpu_custom_call.1
$region0: #{tpu_custom_call.1}
  #allocation0 [shape = 'u32[]', space=smem, size = 0x4, offset = 0x4, fixed_abs, tag = 'smem constant byte address 0x4 - core index']
  #allocation1 [shape = 'u32[72,128]{1,0:T(1,128)}', space=vmem, size = 0x9000, scoped, tag = 'internal scratch']
  %s0 = inlined_call_operand.vmem [shape: s32[8,1], index: 0, kind: input, shape index: {}]
  %s1 = inlined_call_operand.hbm [shape: f32[16,64], index: 1, kind: input, shape index: {}]
  %s2 = inlined_call_operand.hbm [shape: f32[8,64], index: 2, kind: output, shape index: {}]
  %s3 = sld [smem:[#allocation0]]
  $region22: #{tpu_custom_call.1} parent=0
    _
  %s5 = ssub.s32 1, %s3
  %s6 = scalar_select 0, %s5, %s3
  $region1: #{tpu_custom_call.1} parent=0
    #allocation2 [shape = 'u8[8192]{0}', space=vmem, size = 0x2000, scoped, tag = 'input window, operand 1, single buffered']
    #allocation3 [shape = 's32[1]{0}', space=sflag, size = 0x4, scoped, tag = 'scoped memory for tpu_custom_call.1']
    #allocation4 [shape = 's32[1]{0}', space=sflag, size = 0x4, scoped, tag = 'scoped memory for tpu_custom_call.1']
    #allocation5 [shape = 'u8[4096]{0}', space=vmem, size = 0x1000, scoped, tag = 'output window, operand 0, single buffered']
    %7 = vsyncpa [#allocation3], 0
    %8 = vsyncpa [#allocation4], 0
    // Predicated region
    $region2: #{tpu_custom_call.1} parent=1 // pred_check
      _
    $region3: #{tpu_custom_call.1} parent=1 // pred_check_branch
      %10 = sbr.rel (0) target = $region5
    $region4: #{tpu_custom_call.1} parent=1 // pred_region
      _
    $region5: #{tpu_custom_call.1} parent=1 // pred_fallthru
      _
    // Predicated region
    $region6: #{tpu_custom_call.1} parent=1 // pred_check
      _
    $region7: #{tpu_custom_call.1} parent=1 // pred_check_branch
      %12 = sbr.rel (0) target = $region9
    $region8: #{tpu_custom_call.1} parent=1 // pred_region
      %14 = vsyncadd [#allocation3], 0
      %s15 = sshll.u32 %s1, 4
      %s16 = int_to_ptr.hbm [resolvable:$true] %s15
      %s17 = sshll.u32 [#allocation2], 4
      %s18 = int_to_ptr.vmem [resolvable:$true] %s17
      %23 = dma.hbm_to_vmem [thread:$0]  %s16, 256, %s18, [#allocation3], 128, 128, 8
    $region9: #{tpu_custom_call.1} parent=1 // pred_fallthru
      _
    // Predicated region
    $region10: #{tpu_custom_call.1} parent=1 // pred_check
      _
    $region11: #{tpu_custom_call.1} parent=1 // pred_check_branch
      %25 = sbr.rel (0) target = $region13
    $region12: #{tpu_custom_call.1} parent=1 // pred_region
      %27 = dma.done [#allocation3], 256
    $region13: #{tpu_custom_call.1} parent=1 // pred_fallthru
      _
    %v29 = vld [vmem:[%s0] sm:$0xff]
    %v30 = vlaneseq
    %v31 = vand.u32 %v30, 127
    %32 = vset.pattern.permute.xlu0 0
    %33 = vperm.xlu0 %32, %v29
    %v34 = vpop.permute.xlu0 %33
    %vm35 = vcmp.eq.s32.totalorder %v34, %v31
    %v36 = vsel %vm35, 1, 0
    %v37 = vcvt.s32.f32 %v36
    %v38 = vpack.c.bf16 %v37, %v37
    %v39 = vld [vmem:[#allocation2] sm:$0xff]
    %v40 = vld [vmem:[#allocation2 + $0x8] sm:$0xff]
    %v41 = vpack.c.bf16 %v39, %v39
    %v42 = vpack.c.bf16 %v40, %v40
    %v43 = vunpack.c.l.bf16 %v41
    %v44 = vunpack.c.l.bf16 %v42
    %v45 = vsub.f32 %v39, %v43
    %v46 = vsub.f32 %v40, %v44
    %v47 = vpack.c.bf16 %v45, %v45
    %v48 = vpack.c.bf16 %v46, %v46
    %v49 = vunpack.c.l.bf16 %v47
    %v50 = vunpack.c.l.bf16 %v48
    %v51 = vsub.f32 %v45, %v49
    %v52 = vsub.f32 %v46, %v50
    %v53 = vpack.c.bf16 %v52, %v51
    %v56 = vunpack.c.l.b16 %v47
    %v57 = vunpack.c.l.b16 %v48
    %v58 = vpack.c.b16 %v57, %v56
    %vm60 = vcmask 130048
    %v62 = vsel %vm60, %v38, 0
    %64 = vmatpush.bf16.msra.mxu0 0
    %65 = vmatpush.bf16.msra.mxu0 0
    %66 = vmatpush.bf16.msra.mxu0 0
    %67 = vmatpush.bf16.msra.mxu0 0
    %68 = vmatpush.bf16.msra.mxu0 0
    %69 = vmatpush.bf16.msra.mxu0 0
    %70 = vmatpush.bf16.msra.mxu0 0
    %71 = vmatpush.bf16.msra.mxu0 %v58
    %72 = vmatmul.bf16.gmra.mxu0 %v62
    %v73 = vpop.f32.mrf.mxu0
    %v74 = vadd.f32 0.0, %v73
    %v75 = vpop.f32.mrf.mxu0
    %76 = vdwg.mxu0
    %v79 = vunpack.c.l.b16 %v41
    %v80 = vunpack.c.l.b16 %v42
    %v81 = vpack.c.b16 %v80, %v79
    %83 = vmatpush.bf16.msra.mxu0 0
    %84 = vmatpush.bf16.msra.mxu0 0
    %85 = vmatpush.bf16.msra.mxu0 0
    %86 = vmatpush.bf16.msra.mxu0 0
    %87 = vmatpush.bf16.msra.mxu0 0
    %88 = vmatpush.bf16.msra.mxu0 0
    %89 = vmatpush.bf16.msra.mxu0 0
    %90 = vmatpush.bf16.msra.mxu0 %v81
    %91 = vmatmul.bf16.gmra.mxu0 %v62
    %v92 = vpop.f32.mrf.mxu0
    %v93 = vadd.f32 %v74, %v92
    %v94 = vpop.f32.mrf.mxu0
    %95 = vdwg.mxu0
    %96 = vmatpush.bf16.msra.mxu0 0
    %97 = vmatpush.bf16.msra.mxu0 0
    %98 = vmatpush.bf16.msra.mxu0 0
    %99 = vmatpush.bf16.msra.mxu0 0
    %100 = vmatpush.bf16.msra.mxu0 0
    %101 = vmatpush.bf16.msra.mxu0 0
    %102 = vmatpush.bf16.msra.mxu0 0
    %103 = vmatpush.bf16.msra.mxu0 %v53
    %104 = vmatmul.bf16.gmra.mxu0 %v62
    %v105 = vpop.f32.mrf.mxu0
    %v106 = vadd.f32 0.0, %v105
    %v107 = vpop.f32.mrf.mxu0
    %108 = vdwg.mxu0
    %v109 = vadd.f32 %v93, %v106
    %v110 = vxor.u32 %v109, 2147483648
    %v111 = vmul.f32 %v110, 1.442695
    %v112 = vpow.pop %v111
    %v113 = vadd.f32 %v112, 1.0
    %v114 = vrcp.pop %v113
    %v115 = vmul.f32 %v113, %v114
    %v116 = vsub.f32 1.0, %v115
    %v117 = vmul.f32 %v114, %v116
    %v118 = vadd.f32 %v114, %v117
    %vm119 = vweird.f32 %v113
    %vm120 = vweird.f32 %v114
    %vm121 = vmor %vm119, %vm120
    %v122 = vsel %vm121, %v114, %v118
    %v123 = vand.u32 2147483647, %v113
    %vm124 = vcmp.eq.f32.partialorder %v123, 8.507059e+37
    %v125 = vand.u32 %v113, 2147483648
    %v126 = vor.u32 1.1754944e-38, %v125
    %v127 = vsel %vm124, %v126, %v122
    %v128 = vmul.f32 1.0, %v127
    %vm129 = vcmask 523264
    %130 = vst.msk [vmem:[#allocation5] sm:$0xff] %vm129, %v128
    // Predicated region
    $region14: #{tpu_custom_call.1} parent=1 // pred_check
      _
    $region15: #{tpu_custom_call.1} parent=1 // pred_check_branch
      %132 = sbr.rel (0) target = $region17
    $region16: #{tpu_custom_call.1} parent=1 // pred_region
      %134 = vsyncadd [#allocation4], 0
      %s136 = sshll.u32 [#allocation5], 4
      %s137 = int_to_ptr.vmem [resolvable:$true] %s136
      %s138 = sshll.u32 %s2, 4
      %s139 = int_to_ptr.hbm [resolvable:$true] %s138
      %141 = dma.vmem_to_hbm [thread:$0]  %s137, 128, %s139, [#allocation4]
    $region17: #{tpu_custom_call.1} parent=1 // pred_fallthru
      _
    // Predicated region
    $region18: #{tpu_custom_call.1} parent=1 // pred_check
      _
    $region19: #{tpu_custom_call.1} parent=1 // pred_check_branch
      %143 = sbr.rel (0) target = $region21
    $region20: #{tpu_custom_call.1} parent=1 // pred_region
      %145 = dma.done [#allocation4], 128
    $region21: #{tpu_custom_call.1} parent=1 // pred_fallthru
      _
    %146 = vsyncpa [#allocation3], 1
    %147 = vsyncpa [#allocation4], 1

</llo_original>
